<compile_context>
chip_gen: v6e
topology: v6e:2x2x1
jax: 0.10.0
libtpu: 0.0.40
codegen_flags: <defaults>
</compile_context>

<pallas_src>
import math
import functools

import jax
import jax.numpy as jnp
from jax.experimental import pallas as pl
from jax.experimental.pallas import tpu as pltpu


_MIB = 1 << 20


def _row_tile(m, cap=512):
    """Row tile for the (M, C) dense kernels; partial last block is masked."""
    return m if m <= cap else cap


def _mm(a, b, mm_dtype):
    """MXU matmul with optional bf16 operands and f32 accumulation."""
    if mm_dtype is not None and mm_dtype != jnp.float32:
        a = a.astype(mm_dtype)
        b = b.astype(mm_dtype)
    return jnp.dot(a, b, preferred_element_type=jnp.float32)


# ----------------------------------------------------------------------------
# Pallas kernels
# ----------------------------------------------------------------------------

def _qkv_kernel(x_ref, w_ref, b_ref, o_ref, *, mm_dtype):
    # x: (TM, C), w: (C, 3C), b: (1, 3C) -> o: (TM, 3C)   (lane-dense output)
    o_ref[...] = _mm(x_ref[...], w_ref[...], mm_dtype) + b_ref[...]


def _attn_head_kernel(q_ref, k_ref, v_ref, mcol_ref, mrow_ref, rk_ref, rv_ref,
                      o_ref, *, window, mm_dtype):
    # One grid step per (batch, head).
    # q/k/v: (1, 1, T, Dk), mcol: (1, T, 1), mrow: (1, 1, T),
    # rk/rv: (2*window+1, Dk), o: (1, 1, T, Dk)
    T = q_ref.shape[2]
    dk = q_ref.shape[3]
    scale = 1.0 / math.sqrt(dk)
    neg = jnp.float32(-1e4)

    q = q_ref[0, 0] * scale                                  # (T, Dk)
    k = k_ref[0, 0]
    v = v_ref[0, 0]

    # ---- hoisted, computed once per grid step ----
    rows = jax.lax.broadcasted_iota(jnp.int32, (T, T), 0)
    cols = jax.lax.broadcasted_iota(jnp.int32, (T, T), 1)
    diff = cols - rows                                       # j - i
    mask2d = mcol_ref[0] * mrow_ref[0]                       # (T, T)

    # ---- content scores (MXU) ----
    scores = _mm(q, k.T, mm_dtype)                           # (T, T)

    # ---- relative-key bias: MXU dot, then banded placement ----
    #   rel_logits[i, r] = q[i, :] . emb_k[r, :]
    #   scores[i, j]    += rel_logits[i, (j - i) + w]   for |j - i| <= w
    # (identical to the PyTorch pad/reshape skew of
    #  _relative_position_to_absolute_position for the banded embeddings)
    rel_logits = _mm(q, rk_ref[...].T, mm_dtype)             # (T, 2w+1)
    for r in range(-window, window + 1):
        col = rel_logits[:, r + window:r + window + 1]       # (T, 1)
        scores = scores + jnp.where(diff == r, col, 0.0)

    # ---- sequence mask (masked_fill semantics) ----
    scores = jnp.where(mask2d > 0.0, scores, neg)

    # ---- softmax over keys (exact division) ----
    m = jnp.max(scores, axis=-1, keepdims=True)
    e = jnp.exp(scores - m)
    denom = jnp.sum(e, axis=-1, keepdims=True)
    p = e / denom

    # ---- weighted values (MXU) ----
    out = _mm(p, v, mm_dtype)                                # (T, Dk)

    # ---- relative-value contribution: banded extraction, small fma accum ----
    #   out[i, :] += sum_r p[i, i + r] * emb_v[r + w, :]   (valid positions)
    rv = rv_ref[...]
    for r in range(-window, window + 1):
        d_r = jnp.sum(jnp.where(diff == r, p, 0.0),
                      axis=-1, keepdims=True)                # (T, 1)
        out = out + d_r * rv[r + window:r + window + 1, :]

    o_ref[0, 0] = out


def _post_kernel(attn_ref, x_ref, m_ref, wo_ref, bo_ref, g1_ref, be1_ref,
                 w1_ref, bf1_ref, w2_ref, bf2_ref, g2_ref, be2_ref, o_ref,
                 *, eps, mm_dtype):
    # Fused: LN1(x + O-proj(attn)) -> FFN(kernel_size=1) -> LN2(x1 + FFN*mask)
    mask = m_ref[...]                                        # (TM, 1)
    x = x_ref[...]                                           # (TM, C)

    # output projection + residual + LayerNorm (channel dim)
    h = _mm(attn_ref[...], wo_ref[...], mm_dtype) + bo_ref[...]
    z = x + h
    mean = jnp.mean(z, axis=-1, keepdims=True)
    c = z - mean
    var = jnp.mean(c * c, axis=-1, keepdims=True)
    x1 = c * jax.lax.rsqrt(var + eps) * g1_ref[...] + be1_ref[...]

    # FFN (mask -> conv1 -> relu -> mask -> conv2 -> mask), kernel_size = 1
    h1 = _mm(x1 * mask, w1_ref[...], mm_dtype) + bf1_ref[...]
    h1 = jnp.maximum(h1, 0.0) * mask                         # activation=None -> relu
    y2 = _mm(h1, w2_ref[...], mm_dtype) + bf2_ref[...]

    # residual + LayerNorm
    z2 = x1 + y2 * mask
    mean2 = jnp.mean(z2, axis=-1, keepdims=True)
    c2 = z2 - mean2
    var2 = jnp.mean(c2 * c2, axis=-1, keepdims=True)
    o_ref[...] = c2 * jax.lax.rsqrt(var2 + eps) * g2_ref[...] + be2_ref[...]


# ----------------------------------------------------------------------------
# pallas_call wrappers
# ----------------------------------------------------------------------------

def qkv_proj(x2d, w, b, mm_dtype):
    """x2d: (M, C), w: (C, 3C), b: (3C,) -> (M, 3C)."""
    M, Cin = x2d.shape
    Cout = w.shape[1]
    tm = _row_tile(M)
    kern = functools.partial(_qkv_kernel, mm_dtype=mm_dtype)
    return pl.pallas_call(
        kern,
        out_shape=jax.ShapeDtypeStruct((M, Cout), jnp.float32),
        grid=(pl.cdiv(M, tm),),
        in_specs=[
            pl.BlockSpec((tm, Cin), lambda i: (i, 0)),
            pl.BlockSpec((Cin, Cout), lambda i: (0, 0)),
            pl.BlockSpec((1, Cout), lambda i: (0, 0)),
        ],
        out_specs=pl.BlockSpec((tm, Cout), lambda i: (i, 0)),
        compiler_params=pltpu.CompilerParams(dimension_semantics=("parallel",)),
    )(x2d, w, b.reshape(1, -1))


def mha_attention(q, k, v, mask_col, mask_row, rel_k, rel_v, *, window, mm_dtype):
    """q/k/v: (B, H, T, Dk), mask_col: (B, T, 1), mask_row: (B, 1, T),
    rel_k/rel_v: (2*window+1, Dk) -> (B, H, T, Dk)."""
    B, H, T, dk = q.shape
    R = 2 * window + 1

    # explicit scoped-VMEM budget (f32 (T,T) temporaries + double-buffered blocks)
    est = 8 * T * T * 4 + 16 * T * dk * 4 + 4 * _MIB
    vmem_limit = int(min(max(est, 32 * _MIB), 64 * _MIB))

    kern = functools.partial(_attn_head_kernel, window=window, mm_dtype=mm_dtype)
    return pl.pallas_call(
        kern,
        out_shape=jax.ShapeDtypeStruct((B, H, T, dk), jnp.float32),
        grid=(B, H),
        in_specs=[
            pl.BlockSpec((1, 1, T, dk), lambda b, h: (b, h, 0, 0)),
            pl.BlockSpec((1, 1, T, dk), lambda b, h: (b, h, 0, 0)),
            pl.BlockSpec((1, 1, T, dk), lambda b, h: (b, h, 0, 0)),
            pl.BlockSpec((1, T, 1), lambda b, h: (b, 0, 0)),
            pl.BlockSpec((1, 1, T), lambda b, h: (b, 0, 0)),
            pl.BlockSpec((R, dk), lambda b, h: (0, 0)),
            pl.BlockSpec((R, dk), lambda b, h: (0, 0)),
        ],
        out_specs=pl.BlockSpec((1, 1, T, dk), lambda b, h: (b, h, 0, 0)),
        compiler_params=pltpu.CompilerParams(
            dimension_semantics=("parallel", "parallel"),
            vmem_limit_bytes=vmem_limit),
    )(q, k, v, mask_col, mask_row, rel_k, rel_v)


def post_layer(attn2d, x2d, mask_flat, lp, mm_dtype, eps=1e-5):
    """Fused oproj + residual + LN1 + FFN + residual + LN2.  (M, C) rows."""
    M, C = x2d.shape
    F = lp["ffn_w1"].shape[1]
    tm = _row_tile(M)
    kern = functools.partial(_post_kernel, eps=eps, mm_dtype=mm_dtype)
    return pl.pallas_call(
        kern,
        out_shape=jax.ShapeDtypeStruct((M, C), jnp.float32),
        grid=(pl.cdiv(M, tm),),
        in_specs=[
            pl.BlockSpec((tm, C), lambda i: (i, 0)),     # attention output
            pl.BlockSpec((tm, C), lambda i: (i, 0)),     # residual input
            pl.BlockSpec((tm, 1), lambda i: (i, 0)),     # mask
            pl.BlockSpec((C, C), lambda i: (0, 0)),      # wo
            pl.BlockSpec((1, C), lambda i: (0, 0)),      # bo
            pl.BlockSpec((1, C), lambda i: (0, 0)),      # ln1 gamma
            pl.BlockSpec((1, C), lambda i: (0, 0)),      # ln1 beta
            pl.BlockSpec((C, F), lambda i: (0, 0)),      # ffn w1
            pl.BlockSpec((1, F), lambda i: (0, 0)),      # ffn b1
            pl.BlockSpec((F, C), lambda i: (0, 0)),      # ffn w2
            pl.BlockSpec((1, C), lambda i: (0, 0)),      # ffn b2
            pl.BlockSpec((1, C), lambda i: (0, 0)),      # ln2 gamma
            pl.BlockSpec((1, C), lambda i: (0, 0)),      # ln2 beta
        ],
        out_specs=pl.BlockSpec((tm, C), lambda i: (i, 0)),
        compiler_params=pltpu.CompilerParams(dimension_semantics=("parallel",)),
    )(attn2d, x2d, mask_flat,
      lp["wo"], lp["bo"].reshape(1, -1),
      lp["ln1_g"].reshape(1, -1), lp["ln1_b"].reshape(1, -1),
      lp["ffn_w1"], lp["ffn_b1"].reshape(1, -1),
      lp["ffn_w2"], lp["ffn_b2"].reshape(1, -1),
      lp["ln2_g"].reshape(1, -1), lp["ln2_b"].reshape(1, -1))


# ----------------------------------------------------------------------------
# Encoder forward
# ----------------------------------------------------------------------------

def encoder_forward(params, x_nct, x_mask_b1t, *, n_heads, window_size,
                    matmul_dtype=jnp.float32):
    B, C, T = x_nct.shape
    dk = C // n_heads

    x = jnp.transpose(x_nct, (0, 2, 1)).astype(jnp.float32)               # (B, T, C)
    mask_col = jnp.transpose(x_mask_b1t, (0, 2, 1)).astype(jnp.float32)   # (B, T, 1)
    mask_row = x_mask_b1t.astype(jnp.float32)                             # (B, 1, T)
    mask_flat = mask_col.reshape(B * T, 1)

    x = x * mask_col
    x2d = x.reshape(B * T, C)

    for lp in params["layers"]:
        # --- fused QKV projection, then per-head split done by layout (XLA) ---
        qkv = qkv_proj(x2d, lp["w_qkv"], lp["b_qkv"], matmul_dtype)       # (B*T, 3C)
        qkv5 = jnp.transpose(qkv.reshape(B, T, 3, n_heads, dk),
                             (2, 0, 3, 1, 4))                             # (3, B, H, T, dk)

        # --- all-heads self-attention with relative-position bias ---
        attn = mha_attention(qkv5[0], qkv5[1], qkv5[2], mask_col, mask_row,
                             lp["emb_rel_k"][0], lp["emb_rel_v"][0],
                             window=window_size, mm_dtype=matmul_dtype)   # (B, H, T, dk)
        attn2d = jnp.transpose(attn, (0, 2, 1, 3)).reshape(B * T, C)

        # dropout(p=0) is identity
        # --- fused: oproj + residual + LN1 + FFN + residual + LN2 ---
        x2d = post_layer(attn2d, x2d, mask_flat, lp, matmul_dtype)

    x = x2d.reshape(B, T, C) * mask_col
    return jnp.transpose(x, (0, 2, 1))                                    # (B, C, T)


# ----------------------------------------------------------------------------
# Deterministic parameter initialization (shapes follow the PyTorch __init__)
# ----------------------------------------------------------------------------

def _xavier_uniform(key, cin, cout):
    bound = math.sqrt(6.0 / (cin + cout))
    # stored transposed w.r.t. torch Conv1d weight: (Cin, Cout)
    return jax.random.uniform(key, (cin, cout), jnp.float32, -bound, bound)


def init_params(key, hidden, filt, n_heads, n_layers, window_size):
    dk = hidden // n_heads
    layers = []
    for _ in range(n_layers):
        keys = jax.random.split(key, 16)
        key = keys[-1]
        wq = _xavier_uniform(keys[0], hidden, hidden)
        wk = _xavier_uniform(keys[1], hidden, hidden)
        wv = _xavier_uniform(keys[2], hidden, hidden)
        lp = {
            # fused q/k/v projection weight: (C, 3C)
            "w_qkv": jnp.concatenate([wq, wk, wv], axis=1),
            "b_qkv": jnp.zeros((3 * hidden,), jnp.float32),
            "wo": 0.02 * jax.random.normal(keys[3], (hidden, hidden), jnp.float32),
            "bo": jnp.zeros((hidden,), jnp.float32),
            # heads_share=True -> n_heads_rel = 1
            "emb_rel_k": (dk ** -0.5) * jax.random.normal(
                keys[4], (1, 2 * window_size + 1, dk), jnp.float32),
            "emb_rel_v": (dk ** -0.5) * jax.random.normal(
                keys[5], (1, 2 * window_size + 1, dk), jnp.float32),
            "ln1_g": jnp.ones((hidden,), jnp.float32),
            "ln1_b": jnp.zeros((hidden,), jnp.float32),
            # FFN (kernel_size=1): conv weights stored as (Cin, Cout)
            "ffn_w1": 0.02 * jax.random.normal(keys[6], (hidden, filt), jnp.float32),
            "ffn_b1": jnp.zeros((filt,), jnp.float32),
            "ffn_w2": 0.02 * jax.random.normal(keys[7], (filt, hidden), jnp.float32),
            "ffn_b2": jnp.zeros((hidden,), jnp.float32),
            "ln2_g": jnp.ones((hidden,), jnp.float32),
            "ln2_b": jnp.zeros((hidden,), jnp.float32),
        }
        layers.append(lp)
    return {"layers": layers}


# ----------------------------------------------------------------------------

if __name__ == "__main__":
    B, T = 2, 16
    hidden_channels, filter_channels = 64, 128
    n_heads, n_layers, window_size = 4, 2, 4

    key = jax.random.PRNGKey(0)
    kx, kp = jax.random.split(key)

    params = init_params(kp, hidden_channels, filter_channels,
                         n_heads, n_layers, window_size)

    x = jax.random.normal(kx, (B, hidden_channels, T), jnp.float32)   # (B, C, T)
    lengths = jnp.array([T, T - 4], jnp.int32)
    x_mask = (jnp.arange(T)[None, :] < lengths[:, None]).astype(jnp.float32)
    x_mask = x_mask[:, None, :]                                       # (B, 1, T)

    out = encoder_forward(params, x, x_mask,
                          n_heads=n_heads, window_size=window_size)
    jax.block_until_ready(out)
    assert out.shape == (B, hidden_channels, T)
    print("KERNEL_OK")
</pallas_src>

<mosaic_0001>
module attributes {stable_mosaic.version = 11 : i64} {
  func.func @_qkv_kernel(%arg0: i32, %arg1: memref<32x64xf32, #tpu.memory_space<vmem>>, %arg2: memref<64x192xf32, #tpu.memory_space<vmem>>, %arg3: memref<1x192xf32, #tpu.memory_space<vmem>>, %arg4: memref<32x192xf32, #tpu.memory_space<vmem>>) attributes {dimension_semantics = [#tpu.dimension_semantics<parallel>], iteration_bounds = array<i64: 1>, scalar_prefetch = 0 : i64, scratch_operands = 0 : i64, tpu.core_type = #tpu.core_type<tc>, window_params = [{transform_indices = @transform_0, window_bounds = array<i64: 32, 64>}, {pipeline_mode = #tpu.pipeline_mode<synchronous>, transform_indices = @transform_1, window_bounds = array<i64: 64, 192>}, {pipeline_mode = #tpu.pipeline_mode<synchronous>, transform_indices = @transform_2, window_bounds = array<i64: 1, 192>}, {transform_indices = @transform_3, window_bounds = array<i64: 32, 192>}]} {
    %c0 = arith.constant 0 : index
    %c0_0 = arith.constant 0 : index
    %0 = vector.load %arg1[%c0, %c0_0] : memref<32x64xf32, #tpu.memory_space<vmem>>, vector<32x64xf32>
    %c0_1 = arith.constant 0 : index
    %c0_2 = arith.constant 0 : index
    %1 = vector.load %arg2[%c0_1, %c0_2] : memref<64x192xf32, #tpu.memory_space<vmem>>, vector<64x192xf32>
    %cst = arith.constant dense<0.000000e+00> : vector<32x192xf32>
    %2 = tpu.matmul %0, %1, %cst {dimension_numbers = #tpu.dot_dimension_numbers<[1], [0], [0], [1], [0, 0, 1, 1], [], []>} : vector<32x64xf32>, vector<64x192xf32>, vector<32x192xf32> -> vector<32x192xf32>
    %c0_3 = arith.constant 0 : index
    %c0_4 = arith.constant 0 : index
    %3 = vector.load %arg3[%c0_3, %c0_4] : memref<1x192xf32, #tpu.memory_space<vmem>>, vector<1x192xf32>
    %4 = vector.broadcast %3 : vector<1x192xf32> to vector<32x192xf32>
    %5 = arith.addf %2, %4 : vector<32x192xf32>
    %c0_5 = arith.constant 0 : index
    %c0_6 = arith.constant 0 : index
    %6 = vector.load %arg4[%c0_5, %c0_6] : memref<32x192xf32, #tpu.memory_space<vmem>>, vector<32x192xf32>
    tpu.vector_store %arg4[%c0_5, %c0_6], %5 {strides = array<i32>} : memref<32x192xf32, #tpu.memory_space<vmem>>, vector<32x192xf32>,
    return
  }
  func.func @transform_0(%arg0: i32) -> (i32, i32) {
    %c0_i32 = arith.constant 0 : i32
    %c0_i32_0 = arith.constant 0 : i32
    return %arg0, %c0_i32 : i32, i32
  }
  func.func @transform_1(%arg0: i32) -> (i32, i32) {
    %c0_i32 = arith.constant 0 : i32
    %c0_i32_0 = arith.constant 0 : i32
    %c0_i32_1 = arith.constant 0 : i32
    return %c0_i32, %c0_i32_0 : i32, i32
  }
  func.func @transform_2(%arg0: i32) -> (i32, i32) {
    %c0_i32 = arith.constant 0 : i32
    %c0_i32_0 = arith.constant 0 : i32
    %c0_i32_1 = arith.constant 0 : i32
    return %c0_i32, %c0_i32_0 : i32, i32
  }
  func.func @transform_3(%arg0: i32) -> (i32, i32) {
    %c0_i32 = arith.constant 0 : i32
    %c0_i32_0 = arith.constant 0 : i32
    return %arg0, %c0_i32 : i32, i32
  }
}

</mosaic_0001>

<llo_original>
// kernel: tpu_custom_call.1
$region0: #{tpu_custom_call.1}
  #allocation0 [shape = 'u32[]', space=smem, size = 0x4, offset = 0x4, fixed_abs, tag = 'smem constant byte address 0x4 - core index']
  #allocation1 [shape = 'u32[144,128]{1,0:T(1,128)}', space=vmem, size = 0x12000, scoped, tag = 'internal scratch']
  %s0 = inlined_call_operand.hbm [shape: f32[32,64], index: 0, kind: input, shape index: {}]
  %s1 = inlined_call_operand.hbm [shape: f32[64,192], index: 1, kind: input, shape index: {}]
  %s2 = inlined_call_operand.vmem [shape: f32[1,192], index: 2, kind: input, shape index: {}]
  %s3 = inlined_call_operand.hbm [shape: f32[32,192], index: 3, kind: output, shape index: {}]
  %s4 = sld [smem:[#allocation0]]
  $region30: #{tpu_custom_call.1} parent=0
    _
  %s6 = ssub.s32 1, %s4
  %s7 = scalar_select 0, %s6, %s4
  $region1: #{tpu_custom_call.1} parent=0
    #allocation2 [shape = 'u8[16384]{0}', space=vmem, size = 0x4000, scoped, tag = 'input window, operand 0, single buffered']
    #allocation3 [shape = 's32[1]{0}', space=sflag, size = 0x4, scoped, tag = 'scoped memory for tpu_custom_call.1']
    #allocation4 [shape = 's32[1]{0}', space=sflag, size = 0x4, scoped, tag = 'scoped memory for tpu_custom_call.1']
    #allocation5 [shape = 'u8[65536]{0}', space=vmem, size = 0x10000, scoped, tag = 'input window, operand 1, single buffered']
    #allocation6 [shape = 's32[1]{0}', space=sflag, size = 0x4, scoped, tag = 'scoped memory for tpu_custom_call.1']
    #allocation7 [shape = 'u8[32768]{0}', space=vmem, size = 0x8000, scoped, tag = 'output window, operand 0, single buffered']
    %8 = vsyncpa [#allocation3], 0
    %9 = vsyncpa [#allocation6], 0
    %10 = vsyncpa [#allocation4], 0
    // Predicated region
    $region2: #{tpu_custom_call.1} parent=1 // pred_check
      _
    $region3: #{tpu_custom_call.1} parent=1 // pred_check_branch
      %12 = sbr.rel (0) target = $region5
    $region4: #{tpu_custom_call.1} parent=1 // pred_region
      %s14 = ssub.s32 512, 512
      %15 = vsyncadd [#allocation3], %s14
      %s16 = sshll.u32 [#allocation2], 4
      %s17 = int_to_ptr.vmem [resolvable:$true] %s16
      %22 = dma.hbm_to_vmem [thread:$0]  %s0, 512, %s17, [#allocation3], 128, 128, 8
    $region5: #{tpu_custom_call.1} parent=1 // pred_fallthru
      _
    // Predicated region
    $region6: #{tpu_custom_call.1} parent=1 // pred_check
      _
    $region7: #{tpu_custom_call.1} parent=1 // pred_check_branch
      %24 = sbr.rel (0) target = $region9
    $region8: #{tpu_custom_call.1} parent=1 // pred_region
      %s26 = ssub.s32 2048, 2048
      %27 = vsyncadd [#allocation6], %s26
      %s28 = sshll.u32 [#allocation5], 4
      %s29 = int_to_ptr.vmem [resolvable:$true] %s28
      %34 = dma.hbm_to_vmem [thread:$0]  %s1, 2048, %s29, [#allocation6], 256, 256, 16
    $region9: #{tpu_custom_call.1} parent=1 // pred_fallthru
      _
    // Predicated region
    $region10: #{tpu_custom_call.1} parent=1 // pred_check
      _
    $region11: #{tpu_custom_call.1} parent=1 // pred_check_branch
      %36 = sbr.rel (0) target = $region13
    $region12: #{tpu_custom_call.1} parent=1 // pred_region
      _
    $region13: #{tpu_custom_call.1} parent=1 // pred_fallthru
      _
    // Predicated region
    $region14: #{tpu_custom_call.1} parent=1 // pred_check
      _
    $region15: #{tpu_custom_call.1} parent=1 // pred_check_branch
      %38 = sbr.rel (0) target = $region17
    $region16: #{tpu_custom_call.1} parent=1 // pred_region
      %39 = dma.done [#allocation3], 512
    $region17: #{tpu_custom_call.1} parent=1 // pred_fallthru
      _
    // Predicated region
    $region18: #{tpu_custom_call.1} parent=1 // pred_check
      _
    $region19: #{tpu_custom_call.1} parent=1 // pred_check_branch
      %41 = sbr.rel (0) target = $region21
    $region20: #{tpu_custom_call.1} parent=1 // pred_region
      %42 = dma.done [#allocation6], 2048
    $region21: #{tpu_custom_call.1} parent=1 // pred_fallthru
      _
    %v43 = vld [vmem:[#allocation2] sm:$0xff]
    %v44 = vld [vmem:[#allocation2 + $0x8] sm:$0xff]
    %v45 = vld [vmem:[#allocation2 + $0x10] sm:$0xff]
    %v46 = vld [vmem:[#allocation2 + $0x18] sm:$0xff]
    %v47 = vld [vmem:[#allocation5] sm:$0xff]
    %v48 = vld [vmem:[#allocation5 + $0x8] sm:$0xff]
    %v49 = vld [vmem:[#allocation5 + $0x10] sm:$0xff]
    %v50 = vld [vmem:[#allocation5 + $0x18] sm:$0xff]
    %v51 = vld [vmem:[#allocation5 + $0x20] sm:$0xff]
    %v52 = vld [vmem:[#allocation5 + $0x28] sm:$0xff]
    %v53 = vld [vmem:[#allocation5 + $0x30] sm:$0xff]
    %v54 = vld [vmem:[#allocation5 + $0x38] sm:$0xff]
    %v55 = vld [vmem:[#allocation5 + $0x40] sm:$0xff]
    %v56 = vld [vmem:[#allocation5 + $0x48] sm:$0xff]
    %v57 = vld [vmem:[#allocation5 + $0x50] sm:$0xff]
    %v58 = vld [vmem:[#allocation5 + $0x58] sm:$0xff]
    %v59 = vld [vmem:[#allocation5 + $0x60] sm:$0xff]
    %v60 = vld [vmem:[#allocation5 + $0x68] sm:$0xff]
    %v61 = vld [vmem:[#allocation5 + $0x70] sm:$0xff]
    %v62 = vld [vmem:[#allocation5 + $0x78] sm:$0xff]
    %v63 = vld [vmem:[%s2] sm:$0x3]
    %v65 = vlaneseq
    %v66 = vshrl.u32 %v65, 7
    %v67 = vsub.s32 0, %v66
    %v68 = vrot.slane %v63, %v67
    %v69 = vlaneseq
    %v70 = vshrl.u32 %v69, 7
    %v71 = vsub.s32 1, %v70
    %v72 = vrot.slane %v63, %v71
    %vm75 = vcmask 523264
    %v77 = vsel %vm75, %v43, 0
    %v80 = vsel %vm75, %v44, 0
    %v83 = vsel %vm75, %v45, 0
    %v86 = vsel %vm75, %v46, 0
    %88 = vmatprep.subr.mxu0 0.0
    %89 = vmatpush1.msra.mxu0 0.0
    %90 = vmatprep.subr.mxu0 0.0
    %91 = vmatpush1.msra.mxu0 0.0
    %92 = vmatprep.subr.mxu0 0.0
    %93 = vmatpush1.msra.mxu0 0.0
    %94 = vmatprep.subr.mxu0 0.0
    %95 = vmatpush1.msra.mxu0 0.0
    %96 = vmatprep.subr.mxu0 0.0
    %97 = vmatpush1.msra.mxu0 0.0
    %98 = vmatprep.subr.mxu0 0.0
    %99 = vmatpush1.msra.mxu0 0.0
    %100 = vmatprep.subr.mxu0 0.0
    %101 = vmatpush1.msra.mxu0 0.0
    %102 = vmatprep.subr.mxu0 0.0
    %103 = vmatpush1.msra.mxu0 0.0
    %104 = vmatprep.subr.mxu0 %v62
    %105 = vmatpush1.msra.mxu0 %v61
    %106 = vmatprep.subr.mxu0 %v60
    %107 = vmatpush1.msra.mxu0 %v59
    %108 = vmatprep.subr.mxu0 %v58
    %109 = vmatpush1.msra.mxu0 %v57
    %110 = vmatprep.subr.mxu0 %v56
    %111 = vmatpush1.msra.mxu0 %v55
    %112 = vmatprep.subr.mxu0 %v54
    %113 = vmatpush1.msra.mxu0 %v53
    %114 = vmatprep.subr.mxu0 %v52
    %115 = vmatpush1.msra.mxu0 %v51
    %116 = vmatprep.subr.mxu0 %v50
    %117 = vmatpush1.msra.mxu0 %v49
    %118 = vmatprep.subr.mxu0 %v48
    %119 = vmatpush1.msra.mxu0 %v47
    %120 = vmatprep.subr.mxu0 0.0
    %121 = vmatpush2.msra.mxu0 0.0
    %122 = vmatprep.subr.mxu0 0.0
    %123 = vmatpush2.msra.mxu0 0.0
    %124 = vmatprep.subr.mxu0 0.0
    %125 = vmatpush2.msra.mxu0 0.0
    %126 = vmatprep.subr.mxu0 0.0
    %127 = vmatpush2.msra.mxu0 0.0
    %128 = vmatprep.subr.mxu0 0.0
    %129 = vmatpush2.msra.mxu0 0.0
    %130 = vmatprep.subr.mxu0 0.0
    %131 = vmatpush2.msra.mxu0 0.0
    %132 = vmatprep.subr.mxu0 0.0
    %133 = vmatpush2.msra.mxu0 0.0
    %134 = vmatprep.subr.mxu0 0.0
    %135 = vmatpush2.msra.mxu0 0.0
    %136 = vmatprep.subr.mxu0 0.0
    %137 = vmatpush2.msra.mxu0 0.0
    %138 = vmatprep.subr.mxu0 0.0
    %139 = vmatpush2.msra.mxu0 0.0
    %140 = vmatprep.subr.mxu0 0.0
    %141 = vmatpush2.msra.mxu0 0.0
    %142 = vmatprep.subr.mxu0 0.0
    %143 = vmatpush2.msra.mxu0 0.0
    %144 = vmatprep.subr.mxu0 0.0
    %145 = vmatpush2.msra.mxu0 0.0
    %146 = vmatprep.subr.mxu0 0.0
    %147 = vmatpush2.msra.mxu0 0.0
    %148 = vmatprep.subr.mxu0 0.0
    %149 = vmatpush2.msra.mxu0 0.0
    %150 = vmatprep.subr.mxu0 0.0
    %151 = vmatpush2.msra.mxu0 0.0
    %152 = vmatprep.mubr.f32.mxu0 0.0
    %153 = vmatmul.mubr.f32.gmra.mxu0 %v77
    %v154 = vpop.f32.mrf.mxu0
    %v155 = vadd.f32 %v68, %v154
    %v156 = vpop.f32.mrf.mxu0
    %v157 = vadd.f32 %v72, %v156
    %158 = vmatprep.mubr.f32.mxu0 0.0
    %159 = vmatmul.mubr.f32.gmra.mxu0 %v80
    %v160 = vpop.f32.mrf.mxu0
    %v161 = vadd.f32 %v68, %v160
    %v162 = vpop.f32.mrf.mxu0
    %v163 = vadd.f32 %v72, %v162
    %164 = vmatprep.mubr.f32.mxu0 0.0
    %165 = vmatmul.mubr.f32.gmra.mxu0 %v83
    %v166 = vpop.f32.mrf.mxu0
    %v167 = vadd.f32 %v68, %v166
    %v168 = vpop.f32.mrf.mxu0
    %v169 = vadd.f32 %v72, %v168
    %170 = vmatprep.mubr.f32.mxu0 0.0
    %171 = vmatmul.mubr.f32.gmra.mxu0 %v86
    %v172 = vpop.f32.mrf.mxu0
    %v173 = vadd.f32 %v68, %v172
    %v174 = vpop.f32.mrf.mxu0
    %v175 = vadd.f32 %v72, %v174
    %176 = vdwg.mxu0
    %177 = vst [vmem:[#allocation7] sm:$0xff] %v155
    %178 = vst.msk [vmem:[#allocation7 + $0x8] sm:$0xff] %vm75, %v157
    %179 = vst [vmem:[#allocation7 + $0x10] sm:$0xff] %v161
    %180 = vst.msk [vmem:[#allocation7 + $0x18] sm:$0xff] %vm75, %v163
    %181 = vst [vmem:[#allocation7 + $0x20] sm:$0xff] %v167
    %182 = vst.msk [vmem:[#allocation7 + $0x28] sm:$0xff] %vm75, %v169
    %183 = vst [vmem:[#allocation7 + $0x30] sm:$0xff] %v173
    %184 = vst.msk [vmem:[#allocation7 + $0x38] sm:$0xff] %vm75, %v175
    // Predicated region
    $region22: #{tpu_custom_call.1} parent=1 // pred_check
      _
    $region23: #{tpu_custom_call.1} parent=1 // pred_check_branch
      %186 = sbr.rel (0) target = $region25
    $region24: #{tpu_custom_call.1} parent=1 // pred_region
      %s188 = ssub.s32 1024, 1024
      %189 = vsyncadd [#allocation4], %s188
      %s190 = sshll.u32 [#allocation7], 4
      %s191 = int_to_ptr.vmem [resolvable:$true] %s190
      %196 = dma.vmem_to_hbm [thread:$0]  %s191, 1024, %s3, [#allocation4], 256, 256, 16
    $region25: #{tpu_custom_call.1} parent=1 // pred_fallthru
      _
    // Predicated region
    $region26: #{tpu_custom_call.1} parent=1 // pred_check
      _
    $region27: #{tpu_custom_call.1} parent=1 // pred_check_branch
      %198 = sbr.rel (0) target = $region29
    $region28: #{tpu_custom_call.1} parent=1 // pred_region
      %199 = dma.done [#allocation4], 1024
    $region29: #{tpu_custom_call.1} parent=1 // pred_fallthru
      _
    %200 = vsyncpa [#allocation3], 1
    %201 = vsyncpa [#allocation6], 1
    %202 = vsyncpa [#allocation4], 1

</llo_original>
